<compile_context>
chip_gen: v6e
topology: v6e:2x2x1
jax: 0.10.0
libtpu: 0.0.40
codegen_flags: <defaults>
</compile_context>

<pallas_src>
import functools

import jax
import jax.numpy as jnp
from jax.experimental import pallas as pl
from jax.experimental.pallas import tpu as pltpu


def _feature_mlp_kernel(x_ref, w1b1_ref, w2_ref, consts_ref, o_ref, *, eps):
    # x_ref: (tile_n, 1) scalar feature per row (may be NaN / +-inf / OOB garbage
    # in the masked tail block — every op below is safe on garbage).
    xv = x_ref[...]                                     # (tn, 1)
    is_nan = jnp.isnan(xv)                              # (tn, 1)

    # torch.nan_to_num: NaN -> 0, +inf -> f32 max, -inf -> f32 min (one where + clip).
    finfo = jnp.finfo(xv.dtype)
    xc = jnp.where(is_nan, 0.0, jnp.clip(xv, finfo.min, finfo.max))

    # fc1: Linear(1, mid) as a rank-1 MXU matmul, then ReLU.
    w1 = w1b1_ref[0:1, :]                               # (1, mid)
    b1 = w1b1_ref[1:2, :]                               # (1, mid)
    h = jnp.dot(xc, w1, preferred_element_type=jnp.float32) + b1   # (tn, mid)
    h = jnp.maximum(h, 0.0)

    b2 = consts_ref[0:1, :]
    gamma = consts_ref[1:2, :]
    beta = consts_ref[2:3, :]
    embed = consts_ref[3:4, :]

    # fc2: (tn, mid) @ (mid, D) on the MXU.  w2 arrives in bf16 (wrapper cast);
    # cast h to match -> single-pass bf16 MXU, f32 accumulate.
    w2 = w2_ref[...]
    y = jnp.dot(h.astype(w2.dtype), w2, preferred_element_type=jnp.float32) + b2

    # LayerNorm over last dim: var = E[y^2] - mean^2 so both XLU reductions issue
    # back-to-back (shorter dependency chain); clamp tiny negative from rounding.
    d_inv = 1.0 / y.shape[-1]
    mean = jnp.sum(y, axis=-1, keepdims=True) * d_inv
    ex2 = jnp.sum(y * y, axis=-1, keepdims=True) * d_inv
    var = jnp.maximum(ex2 - mean * mean, 0.0)
    yn = (y - mean) * jax.lax.rsqrt(var + eps)
    yn = yn * gamma + beta

    # Missing-value substitution: NaN rows get the embedding (broadcast over D).
    o_ref[...] = jnp.where(is_nan, embed, yn).astype(o_ref.dtype)


def _cdiv(a, b):
    return (a + b - 1) // b


def _round_up(a, b):
    return _cdiv(a, b) * b


def feature_mlp(x, params, *, eps=1e-12, tile_n=2048, fc2_bf16=True,
                out_dtype=jnp.float32):
    """x: (B, T, 1) float32 with NaN marking missing. Returns (B, T, D) in out_dtype.

    D (hidden_size) should be a multiple of 128 so output stores are lane-dense
    (unmasked vst); other D still works but falls back to masked partial stores.
    # TODO(synk): for non-128-multiple production D, pad the lane dim of w2/consts
    # and mask the LayerNorm reduction instead of taking the masked-store path.
    """
    B, T, one = x.shape
    assert one == 1
    mid, D = params["w2"].shape
    N = B * T

    # Pack parameters to cut the number of pipelined inputs (fewer DMA descriptors).
    w1b1 = jnp.concatenate([params["w1"], params["b1"]], axis=0)          # (2, mid)
    consts = jnp.concatenate(
        [params["b2"], params["gamma"], params["beta"], params["missing_embed"]],
        axis=0)                                                           # (4, D)
    w2 = params["w2"].astype(jnp.bfloat16) if fc2_bf16 else params["w2"]  # (mid, D)

    out_itemsize = jnp.dtype(out_dtype).itemsize
    w2_itemsize = jnp.dtype(w2.dtype).itemsize

    # Row tile: multiple of 8 sublanes, large enough to amortize the ~0.35 us
    # per-grid-step overhead, but capped so the grid keeps >= 2 steps (v7x has two
    # TensorCores; the "parallel" grid axis is what shards across them).
    tile_n = max(8, min(_round_up(int(tile_n), 8), _round_up(_cdiv(N, 2), 8)))

    # Shrink the tile until the double-buffered working set fits a ~40 MiB budget
    # (well under v7x's 64 MiB physical VMEM, above v5e's 16 MiB scoped default).
    # Params are counted x2: the default pipeline still allocates two buffers even
    # though their constant index_map means they're only DMA'd once.
    param_bytes = 2 * mid * 4 + mid * D * w2_itemsize + 4 * D * 4

    def working_set(tn):
        return 2 * tn * (4 + D * out_itemsize) + 2 * param_bytes

    vmem_budget = 40 * 1024 * 1024
    while tile_n > 8 and working_set(tile_n) > vmem_budget:
        tile_n = max(8, _round_up(tile_n // 2, 8))

    grid = _cdiv(N, tile_n)            # non-divisible tail handled by Pallas masking
    vmem_limit = int(min(vmem_budget,
                         max(16 * 1024 * 1024, working_set(tile_n) + (2 << 20))))

    x2 = x.reshape(N, 1)               # no padding, no post-slice

    kernel = functools.partial(_feature_mlp_kernel, eps=eps)
    const_map = lambda i: (0, 0)       # broadcast params to every row tile

    # Advisory cost for XLA scheduling around this (memory-bound) call.
    flops = 2 * N * mid * (1 + D)
    bytes_accessed = (N * 4                              # x in
                      + N * D * out_itemsize             # out
                      + 2 * mid * 4 + mid * D * w2_itemsize + 4 * D * 4)  # params
    cost = pl.CostEstimate(flops=flops, transcendentals=N,
                           bytes_accessed=bytes_accessed)

    out = pl.pallas_call(
        kernel,
        out_shape=jax.ShapeDtypeStruct((N, D), out_dtype),
        grid_spec=pltpu.PrefetchScalarGridSpec(
            num_scalar_prefetch=0,
            grid=(grid,),
            in_specs=[
                pl.BlockSpec((tile_n, 1), lambda i: (i, 0)),   # x rows
                pl.BlockSpec((2, mid), const_map),             # w1 | b1
                pl.BlockSpec((mid, D), const_map),             # w2 (bf16)
                pl.BlockSpec((4, D), const_map),               # b2|gamma|beta|embed
            ],
            out_specs=pl.BlockSpec((tile_n, D), lambda i: (i, 0)),
        ),
        compiler_params=pltpu.CompilerParams(
            dimension_semantics=("parallel",),
            vmem_limit_bytes=vmem_limit),
        cost_estimate=cost,
    )(x2, w1b1, w2, consts)

    return out.reshape(B, T, D)


def init_params(key, hidden_size):
    """Deterministic synthetic parameters matching _FeatureMLP.__init__ shapes."""
    mid = hidden_size // 2
    k1, k2, k3, k4, k5 = jax.random.split(key, 5)
    return {
        # fc1: Linear(1, mid) -> torch weight (mid, 1); stored transposed (1, mid)
        "w1": jax.random.normal(k1, (1, mid), jnp.float32) * 0.5,
        "b1": jax.random.normal(k2, (1, mid), jnp.float32) * 0.1,
        # fc2: Linear(mid, hidden) -> torch weight (hidden, mid); stored (mid, hidden)
        "w2": jax.random.normal(k3, (mid, hidden_size), jnp.float32) * 0.2,
        "b2": jax.random.normal(k4, (1, hidden_size), jnp.float32) * 0.1,
        # LayerNorm(hidden)
        "gamma": jnp.ones((1, hidden_size), jnp.float32),
        "beta": jnp.zeros((1, hidden_size), jnp.float32),
        # Embedding(1, hidden)
        "missing_embed": jax.random.normal(k5, (1, hidden_size), jnp.float32),
    }


def reference_jax(x, params, eps=1e-12):
    """Plain-JAX full-f32 reference mirroring the torch forward (sanity check)."""
    hp = jax.lax.Precision.HIGHEST
    xc = jnp.nan_to_num(x)
    h = jnp.maximum(jnp.dot(xc, params["w1"], precision=hp) + params["b1"], 0.0)
    y = jnp.dot(h, params["w2"], precision=hp) + params["b2"]
    mean = y.mean(-1, keepdims=True)
    var = ((y - mean) ** 2).mean(-1, keepdims=True)
    yn = (y - mean) / jnp.sqrt(var + eps) * params["gamma"] + params["beta"]
    mask = jnp.isnan(x).astype(jnp.float32)              # (B,T,1)
    embed = params["missing_embed"][None]                # (1,1,D)
    return yn * (1 - mask) + embed * mask


if __name__ == "__main__":
    # Small demo shapes; hidden=128 keeps the output lane-dense (D multiple of 128).
    B, T, D = 2, 8, 128
    key = jax.random.PRNGKey(0)
    kx, kp, km = jax.random.split(key, 3)

    params = init_params(kp, D)

    x = jax.random.normal(kx, (B, T, 1), jnp.float32)
    # inject NaNs (missing clinical features) deterministically
    nan_mask = jax.random.bernoulli(km, 0.25, (B, T, 1))
    x = jnp.where(nan_mask, jnp.nan, x)

    out = feature_mlp(x, params)
    out = jax.block_until_ready(out)

    ref = reference_jax(x, params)
    assert out.shape == (B, T, D)
    # fc2 deliberately runs in bf16 on the MXU (per perf review), so compare
    # against the full-f32 reference with a bf16-appropriate tolerance.
    assert jnp.allclose(out, ref, atol=2e-2, rtol=2e-2), "mismatch vs reference"

    print("KERNEL_OK")
</pallas_src>

<mosaic_0001>
module attributes {stable_mosaic.version = 11 : i64} {
  func.func @_feature_mlp_kernel(%arg0: i32, %arg1: memref<8x1xf32, #tpu.memory_space<vmem>>, %arg2: memref<2x64xf32, #tpu.memory_space<vmem>>, %arg3: memref<64x128xbf16, #tpu.memory_space<vmem>>, %arg4: memref<4x128xf32, #tpu.memory_space<vmem>>, %arg5: memref<8x128xf32, #tpu.memory_space<vmem>>) attributes {dimension_semantics = [#tpu.dimension_semantics<parallel>], iteration_bounds = array<i64: 2>, scalar_prefetch = 0 : i64, scratch_operands = 0 : i64, tpu.core_type = #tpu.core_type<tc>, window_params = [{transform_indices = @transform_0, window_bounds = array<i64: 8, 1>}, {pipeline_mode = #tpu.pipeline_mode<synchronous>, transform_indices = @transform_1, window_bounds = array<i64: 2, 64>}, {pipeline_mode = #tpu.pipeline_mode<synchronous>, transform_indices = @transform_2, window_bounds = array<i64: 64, 128>}, {pipeline_mode = #tpu.pipeline_mode<synchronous>, transform_indices = @transform_3, window_bounds = array<i64: 4, 128>}, {transform_indices = @transform_4, window_bounds = array<i64: 8, 128>}]} {
    %c0 = arith.constant 0 : index
    %c0_0 = arith.constant 0 : index
    %0 = vector.load %arg1[%c0, %c0_0] : memref<8x1xf32, #tpu.memory_space<vmem>>, vector<8x1xf32>
    %1 = arith.cmpf one, %0, %0 : vector<8x1xf32>
    %cst = arith.constant -3.40282347E+38 : f32
    %cst_1 = arith.constant 3.40282347E+38 : f32
    %2 = vector.broadcast %cst : f32 to vector<8x1xf32>
    %3 = arith.maximumf %2, %0 : vector<8x1xf32>
    %4 = vector.broadcast %cst_1 : f32 to vector<8x1xf32>
    %5 = arith.minimumf %4, %3 : vector<8x1xf32>
    %cst_2 = arith.constant 0.000000e+00 : f32
    %6 = vector.broadcast %cst_2 : f32 to vector<8x1xf32>
    %7 = arith.select %1, %6, %5 : vector<8x1xi1>, vector<8x1xf32>
    %c0_3 = arith.constant 0 : index
    %c0_4 = arith.constant 0 : index
    %8 = vector.load %arg2[%c0_3, %c0_4] : memref<2x64xf32, #tpu.memory_space<vmem>>, vector<1x64xf32>
    %c1 = arith.constant 1 : index
    %c0_5 = arith.constant 0 : index
    %9 = vector.load %arg2[%c1, %c0_5] : memref<2x64xf32, #tpu.memory_space<vmem>>, vector<1x64xf32>
    %cst_6 = arith.constant dense<0.000000e+00> : vector<8x64xf32>
    %10 = tpu.matmul %7, %8, %cst_6 {dimension_numbers = #tpu.dot_dimension_numbers<[1], [0], [0], [1], [0, 0, 1, 1], [], []>} : vector<8x1xf32>, vector<1x64xf32>, vector<8x64xf32> -> vector<8x64xf32>
    %11 = vector.broadcast %9 : vector<1x64xf32> to vector<8x64xf32>
    %12 = arith.addf %10, %11 : vector<8x64xf32>
    %cst_7 = arith.constant 0.000000e+00 : f32
    %13 = vector.broadcast %cst_7 : f32 to vector<8x64xf32>
    %14 = arith.maximumf %12, %13 : vector<8x64xf32>
    %c0_8 = arith.constant 0 : index
    %c0_9 = arith.constant 0 : index
    %15 = vector.load %arg4[%c0_8, %c0_9] : memref<4x128xf32, #tpu.memory_space<vmem>>, vector<1x128xf32>
    %c1_10 = arith.constant 1 : index
    %c0_11 = arith.constant 0 : index
    %16 = vector.load %arg4[%c1_10, %c0_11] : memref<4x128xf32, #tpu.memory_space<vmem>>, vector<1x128xf32>
    %c2 = arith.constant 2 : index
    %c0_12 = arith.constant 0 : index
    %17 = vector.load %arg4[%c2, %c0_12] : memref<4x128xf32, #tpu.memory_space<vmem>>, vector<1x128xf32>
    %c3 = arith.constant 3 : index
    %c0_13 = arith.constant 0 : index
    %18 = vector.load %arg4[%c3, %c0_13] : memref<4x128xf32, #tpu.memory_space<vmem>>, vector<1x128xf32>
    %c0_14 = arith.constant 0 : index
    %c0_15 = arith.constant 0 : index
    %19 = vector.load %arg3[%c0_14, %c0_15] : memref<64x128xbf16, #tpu.memory_space<vmem>>, vector<64x128xbf16>
    %20 = arith.truncf %14 : vector<8x64xf32> to vector<8x64xbf16>
    %cst_16 = arith.constant dense<0.000000e+00> : vector<8x128xf32>
    %21 = tpu.matmul %20, %19, %cst_16 {dimension_numbers = #tpu.dot_dimension_numbers<[1], [0], [0], [1], [0, 0, 1, 1], [], []>} : vector<8x64xbf16>, vector<64x128xbf16>, vector<8x128xf32> -> vector<8x128xf32>
    %22 = vector.broadcast %15 : vector<1x128xf32> to vector<8x128xf32>
    %23 = arith.addf %21, %22 : vector<8x128xf32>
    %cst_17 = arith.constant dense<0.000000e+00> : vector<8xf32>
    %24 = vector.multi_reduction <add>, %23, %cst_17 [1] : vector<8x128xf32> to vector<8xf32>
    %25 = vector.shape_cast %24 : vector<8xf32> to vector<8x1xf32>
    %cst_18 = arith.constant 7.812500e-03 : f32
    %26 = vector.broadcast %cst_18 : f32 to vector<8x1xf32>
    %27 = arith.mulf %25, %26 : vector<8x1xf32>
    %28 = arith.mulf %23, %23 : vector<8x128xf32>
    %cst_19 = arith.constant dense<0.000000e+00> : vector<8xf32>
    %29 = vector.multi_reduction <add>, %28, %cst_19 [1] : vector<8x128xf32> to vector<8xf32>
    %30 = vector.shape_cast %29 : vector<8xf32> to vector<8x1xf32>
    %cst_20 = arith.constant 7.812500e-03 : f32
    %31 = vector.broadcast %cst_20 : f32 to vector<8x1xf32>
    %32 = arith.mulf %30, %31 : vector<8x1xf32>
    %33 = arith.mulf %27, %27 : vector<8x1xf32>
    %34 = arith.subf %32, %33 : vector<8x1xf32>
    %cst_21 = arith.constant 0.000000e+00 : f32
    %35 = vector.broadcast %cst_21 : f32 to vector<8x1xf32>
    %36 = arith.maximumf %34, %35 : vector<8x1xf32>
    %37 = vector.broadcast %27 : vector<8x1xf32> to vector<8x128xf32>
    %38 = arith.subf %23, %37 : vector<8x128xf32>
    %cst_22 = arith.constant 9.99999996E-13 : f32
    %39 = vector.broadcast %cst_22 : f32 to vector<8x1xf32>
    %40 = arith.addf %36, %39 : vector<8x1xf32>
    %41 = math.rsqrt %40 : vector<8x1xf32>
    %42 = vector.broadcast %41 : vector<8x1xf32> to vector<8x128xf32>
    %43 = arith.mulf %38, %42 : vector<8x128xf32>
    %44 = vector.broadcast %16 : vector<1x128xf32> to vector<8x128xf32>
    %45 = arith.mulf %43, %44 : vector<8x128xf32>
    %46 = vector.broadcast %17 : vector<1x128xf32> to vector<8x128xf32>
    %47 = arith.addf %45, %46 : vector<8x128xf32>
    %48 = vector.shape_cast %1 : vector<8x1xi1> to vector<8x1xi1>
    %49 = vector.broadcast %48 : vector<8x1xi1> to vector<8x128xi1>
    %50 = vector.shape_cast %18 : vector<1x128xf32> to vector<1x128xf32>
    %51 = vector.broadcast %50 : vector<1x128xf32> to vector<8x128xf32>
    %52 = arith.select %49, %51, %47 : vector<8x128xi1>, vector<8x128xf32>
    %c0_23 = arith.constant 0 : index
    %c0_24 = arith.constant 0 : index
    %53 = vector.load %arg5[%c0_23, %c0_24] : memref<8x128xf32, #tpu.memory_space<vmem>>, vector<8x128xf32>
    tpu.vector_store %arg5[%c0_23, %c0_24], %52 {strides = array<i32>} : memref<8x128xf32, #tpu.memory_space<vmem>>, vector<8x128xf32>,
    return
  }
  func.func @transform_0(%arg0: i32) -> (i32, i32) {
    %c0_i32 = arith.constant 0 : i32
    %c0_i32_0 = arith.constant 0 : i32
    return %arg0, %c0_i32 : i32, i32
  }
  func.func @transform_1(%arg0: i32) -> (i32, i32) {
    %c0_i32 = arith.constant 0 : i32
    %c0_i32_0 = arith.constant 0 : i32
    %c0_i32_1 = arith.constant 0 : i32
    return %c0_i32, %c0_i32_0 : i32, i32
  }
  func.func @transform_2(%arg0: i32) -> (i32, i32) {
    %c0_i32 = arith.constant 0 : i32
    %c0_i32_0 = arith.constant 0 : i32
    %c0_i32_1 = arith.constant 0 : i32
    return %c0_i32, %c0_i32_0 : i32, i32
  }
  func.func @transform_3(%arg0: i32) -> (i32, i32) {
    %c0_i32 = arith.constant 0 : i32
    %c0_i32_0 = arith.constant 0 : i32
    %c0_i32_1 = arith.constant 0 : i32
    return %c0_i32, %c0_i32_0 : i32, i32
  }
  func.func @transform_4(%arg0: i32) -> (i32, i32) {
    %c0_i32 = arith.constant 0 : i32
    %c0_i32_0 = arith.constant 0 : i32
    return %arg0, %c0_i32 : i32, i32
  }
}

</mosaic_0001>

<llo_original>
// kernel: tpu_custom_call.1
$region0: #{tpu_custom_call.1}
  #allocation0 [shape = 'u32[]', space=smem, size = 0x4, offset = 0x4, fixed_abs, tag = 'smem constant byte address 0x4 - core index']
  #allocation1 [shape = 'u32[144,128]{1,0:T(1,128)}', space=vmem, size = 0x12000, scoped, tag = 'internal scratch']
  %s0 = inlined_call_operand.vmem [shape: f32[16,1], index: 0, kind: input, shape index: {}]
  %s1 = inlined_call_operand.vmem [shape: f32[2,64], index: 1, kind: input, shape index: {}]
  %s2 = inlined_call_operand.hbm [shape: bf16[64,128], index: 2, kind: input, shape index: {}]
  %s3 = inlined_call_operand.vmem [shape: f32[4,128], index: 3, kind: input, shape index: {}]
  %s4 = inlined_call_operand.hbm [shape: f32[16,128], index: 4, kind: output, shape index: {}]
  %s5 = sld [smem:[#allocation0]]
  $region53: #{tpu_custom_call.1} parent=0
    _
  %s7 = ssub.s32 1, %s5
  %s8 = scalar_select 0, %s7, %s5
  $region1: #{tpu_custom_call.1} parent=0
    #allocation2 [shape = 'u8[16384]{0}', space=vmem, size = 0x4000, scoped, tag = 'input window, operand 2, single buffered']
    #allocation3 [shape = 's32[2]{0}', space=sflag, size = 0x8, scoped, tag = 'scoped memory for tpu_custom_call.1']
    #allocation4 [shape = 's32[2]{0}', space=sflag, size = 0x8, scoped, tag = 'scoped memory for tpu_custom_call.1']
    #allocation5 [shape = 'u8[8192]{0}', space=vmem, size = 0x2000, scoped, tag = 'output window, operand 0']
    %9 = vsyncpa [#allocation3], 0
    %10 = vsyncpa [#allocation4], 0
    %s11 = scalar_lea.sflag [#allocation4], 1
    %12 = vsyncpa %s11, 0
    loop: start=0, step=1, limit=4
    $region2: #{tpu_custom_call.1} parent=1 // loop_pre_header
      _
    $region3: #{tpu_custom_call.1} parent=1 // loop_header
      %s14 = sphi 0, %s18
      %p15 = scmp.ge.s32.totalorder %s14, 4
      %s24 = sphi 0, %s26
      %s27 = sphi 0, %s24
      %s28 = sphi 0, %s27
      %s44 = sphi 0, %s28
      %s48 = sphi 0, %s48
      %s50 = sphi 0, %s48
      %s51 = sphi 0, %s50
      %s65 = sphi 0, %s51
      %s69 = sphi 0, %s69
      %s71 = sphi 0, %s69
      %s72 = sphi 0, %s71
      %s86 = sphi 0, %s72
      %s90 = sphi 0, %s90
      %s92 = sphi 0, %s90
      %s93 = sphi 0, %s92
      %s107 = sphi 0, %s93
      %s113 = sphi 0, %s115
      %s116 = sphi 0, %s113
      %s117 = sphi 0, %s116
      %s133 = sphi 0, %s117
    $region4: #{tpu_custom_call.1} parent=1 // loop_header_branch
      %17 = sbr.rel (%p15) target = $region8
    $region5: #{tpu_custom_call.1} parent=1 // loop_body
      %s19 = ssub.s32 %s14, 1
      %s20 = ssub.s32 %s14, 2
      %s21 = sadd.s32 %s14, 1
      %s22 = ssub.s32 %s14, %s21
      %p23 = scmp.eq.s32.totalorder %s22, 0
      %s25 = sadd.s32 %s24, 1
      %s26 = scalar_select %p23, %s24, %s25
      %p29 = pneg %p23
      %p30 = scmp.eq.s32.totalorder %s14, 1
      %p31 = por %p29, %p30
      %p32 = scmp.ne.s32.totalorder %s24, %s27
      %p33 = scmp.eq.s32.totalorder %s14, 0
      %p34 = por %p32, %p33
      %p35 = scmp.ne.s32.totalorder %s24, %s27
      %p36 = scmp.eq.s32.totalorder %s19, 1
      %p37 = por %p35, %p36
      %p38 = scmp.ne.s32.totalorder %s27, %s28
      %p39 = scmp.eq.s32.totalorder %s19, 0
      %p40 = por %p38, %p39
      %p41 = scmp.ne.s32.totalorder %s27, %s28
      %p42 = scmp.eq.s32.totalorder %s20, 1
      %p43 = por %p41, %p42
      %p45 = scmp.ne.s32.totalorder %s28, %s44
      %p46 = scmp.eq.s32.totalorder %s20, 0
      %p47 = por %p45, %p46
      %s49 = sadd.s32 %s48, 1
      %p52 = scmp.eq.s32.totalorder %s14, 1
      %p53 = scmp.ne.s32.totalorder %s48, %s50
      %p54 = scmp.eq.s32.totalorder %s14, 0
      %p55 = por %p53, %p54
      %p56 = scmp.ne.s32.totalorder %s48, %s50
      %p57 = scmp.eq.s32.totalorder %s19, 1
      %p58 = por %p56, %p57
      %p59 = scmp.ne.s32.totalorder %s50, %s51
      %p60 = scmp.eq.s32.totalorder %s19, 0
      %p61 = por %p59, %p60
      %p62 = scmp.ne.s32.totalorder %s50, %s51
      %p63 = scmp.eq.s32.totalorder %s20, 1
      %p64 = por %p62, %p63
      %p66 = scmp.ne.s32.totalorder %s51, %s65
      %p67 = scmp.eq.s32.totalorder %s20, 0
      %p68 = por %p66, %p67
      %s70 = sadd.s32 %s69, 1
      %p73 = scmp.eq.s32.totalorder %s14, 1
      %p74 = scmp.ne.s32.totalorder %s69, %s71
      %p75 = scmp.eq.s32.totalorder %s14, 0
      %p76 = por %p74, %p75
      %p77 = scmp.ne.s32.totalorder %s69, %s71
      %p78 = scmp.eq.s32.totalorder %s19, 1
      %p79 = por %p77, %p78
      %p80 = scmp.ne.s32.totalorder %s71, %s72
      %p81 = scmp.eq.s32.totalorder %s19, 0
      %p82 = por %p80, %p81
      %p83 = scmp.ne.s32.totalorder %s71, %s72
      %p84 = scmp.eq.s32.totalorder %s20, 1
      %p85 = por %p83, %p84
      %p87 = scmp.ne.s32.totalorder %s72, %s86
      %p88 = scmp.eq.s32.totalorder %s20, 0
      %p89 = por %p87, %p88
      %s91 = sadd.s32 %s90, 1
      %p94 = scmp.eq.s32.totalorder %s14, 1
      %p95 = scmp.ne.s32.totalorder %s90, %s92
      %p96 = scmp.eq.s32.totalorder %s14, 0
      %p97 = por %p95, %p96
      %p98 = scmp.ne.s32.totalorder %s90, %s92
      %p99 = scmp.eq.s32.totalorder %s19, 1
      %p100 = por %p98, %p99
      %p101 = scmp.ne.s32.totalorder %s92, %s93
      %p102 = scmp.eq.s32.totalorder %s19, 0
      %p103 = por %p101, %p102
      %p104 = scmp.ne.s32.totalorder %s92, %s93
      %p105 = scmp.eq.s32.totalorder %s20, 1
      %p106 = por %p104, %p105
      %p108 = scmp.ne.s32.totalorder %s93, %s107
      %p109 = scmp.eq.s32.totalorder %s20, 0
      %p110 = por %p108, %p109
      %s111 = ssub.s32 %s14, %s21
      %p112 = scmp.eq.s32.totalorder %s111, 0
      %s114 = sadd.s32 %s113, 1
      %s115 = scalar_select %p112, %s113, %s114
      %p118 = pneg %p112
      %p119 = scmp.eq.s32.totalorder %s14, 1
      %p120 = por %p118, %p119
      %p121 = scmp.ne.s32.totalorder %s113, %s116
      %p122 = scmp.eq.s32.totalorder %s14, 0
      %p123 = por %p121, %p122
      %p124 = scmp.ne.s32.totalorder %s113, %s116
      %p125 = scmp.eq.s32.totalorder %s19, 1
      %p126 = por %p124, %p125
      %p127 = scmp.ne.s32.totalorder %s116, %s117
      %p128 = scmp.eq.s32.totalorder %s19, 0
      %p129 = por %p127, %p128
      %p130 = scmp.ne.s32.totalorder %s116, %s117
      %p131 = scmp.eq.s32.totalorder %s20, 1
      %p132 = por %p130, %p131
      %p134 = scmp.ne.s32.totalorder %s117, %s133
      %p135 = scmp.eq.s32.totalorder %s20, 0
      %p136 = por %p134, %p135
      %p137 = scmp.le.s32.totalorder 1, %s14
      %p138 = scmp.lt.s32.totalorder %s14, 3
      %p139 = pnand %p137, %p138
      %p140 = pneg %p139
      // Predicated region
      $region9: #{tpu_custom_call.1} parent=5 // pred_check
        _
      $region10: #{tpu_custom_call.1} parent=5 // pred_check_branch
        %142 = sbr.rel (%p139) target = $region12
      $region11: #{tpu_custom_call.1} parent=5 // pred_region
        %s143 = ssub.s32 %s14, 1
        // Predicated region
        $region13: #{tpu_custom_call.1} parent=11 // pred_check
          %p144 = pneg %p61
        $region14: #{tpu_custom_call.1} parent=11 // pred_check_branch
          %146 = sbr.rel (%p144) target = $region16
        $region15: #{tpu_custom_call.1} parent=11 // pred_region
          _
        $region16: #{tpu_custom_call.1} parent=11 // pred_fallthru
          _
        // Predicated region
        $region17: #{tpu_custom_call.1} parent=11 // pred_check
          %p147 = pneg %p82
        $region18: #{tpu_custom_call.1} parent=11 // pred_check_branch
          %149 = sbr.rel (%p147) target = $region20
        $region19: #{tpu_custom_call.1} parent=11 // pred_region
          %s151 = ssub.s32 512, 512
          %152 = vsyncadd [#allocation3], %s151
          %s153 = sshll.u32 [#allocation2], 4
          %s154 = int_to_ptr.vmem [resolvable:$true] %s153
          %159 = dma.hbm_to_vmem [thread:$0]  %s2, 512, %s154, [#allocation3], 64, 64, 4
        $region20: #{tpu_custom_call.1} parent=11 // pred_fallthru
          _
        // Predicated region
        $region21: #{tpu_custom_call.1} parent=11 // pred_check
          %p160 = pneg %p103
        $region22: #{tpu_custom_call.1} parent=11 // pred_check_branch
          %162 = sbr.rel (%p160) target = $region24
        $region23: #{tpu_custom_call.1} parent=11 // pred_region
          _
        $region24: #{tpu_custom_call.1} parent=11 // pred_fallthru
          _
      $region12: #{tpu_custom_call.1} parent=5 // pred_fallthru
        _
      %p163 = scmp.lt.s32.totalorder %s14, 2
      // Predicated region
      $region25: #{tpu_custom_call.1} parent=5 // pred_check
        %p164 = pneg %p163
      $region26: #{tpu_custom_call.1} parent=5 // pred_check_branch
        %166 = sbr.rel (%p164) target = $region28
      $region27: #{tpu_custom_call.1} parent=5 // pred_region
        // Predicated region
        $region29: #{tpu_custom_call.1} parent=27 // pred_check
          %p167 = pneg %p34
        $region30: #{tpu_custom_call.1} parent=27 // pred_check_branch
          %169 = sbr.rel (%p167) target = $region32
        $region31: #{tpu_custom_call.1} parent=27 // pred_region
          %p170 = scmp.lt.s32.totalorder %s14, 1
          %s171 = scalar_select %p170, %s14, 1
          %s172 = smul.addr %s171, 8
          %s173 = scalar_lea.vmem %s0, %s172
        $region32: #{tpu_custom_call.1} parent=27 // pred_fallthru
          _
      $region28: #{tpu_custom_call.1} parent=5 // pred_fallthru
        _
      %p174 = scmp.le.s32.totalorder 1, %s14
      %p175 = scmp.lt.s32.totalorder %s14, 3
      %p176 = pnand %p174, %p175
      %p177 = pneg %p176
      // Predicated region
      $region33: #{tpu_custom_call.1} parent=5 // pred_check
        _
      $region34: #{tpu_custom_call.1} parent=5 // pred_check_branch
        %179 = sbr.rel (%p176) target = $region36
      $region35: #{tpu_custom_call.1} parent=5 // pred_region
        %s180 = ssub.s32 %s14, 1
        // Predicated region
        $region37: #{tpu_custom_call.1} parent=35 // pred_check
          %p181 = pneg %p82
        $region38: #{tpu_custom_call.1} parent=35 // pred_check_branch
          %183 = sbr.rel (%p181) target = $region40
        $region39: #{tpu_custom_call.1} parent=35 // pred_region
          %184 = dma.done [#allocation3], 512
        $region40: #{tpu_custom_call.1} parent=35 // pred_fallthru
          _
        %p185 = scmp.lt.s32.totalorder %s19, 1
        %s186 = scalar_select %p185, %s19, 1
        %s187 = smul.addr %s186, 8
        %s188 = scalar_lea.vmem %s0, %s187
        %p189 = pneg %p40
        %p190 = pneg %p37
        %p191 = pneg %p61
        %p192 = pneg %p58
        %p193 = pneg %p82
        %p194 = pneg %p79
        %p195 = pneg %p103
        %p196 = pneg %p100
        %p197 = pneg %p129
        %p198 = pneg %p126
        %s199 = sand.u32 %s116, 1
        %s200 = scalar_lea.sflag [#allocation4], %s199
        %s201 = sand.u32 %s116, 1
        %s202 = smul.addr %s201, 8
        %s203 = scalar_lea.vmem [#allocation5], %s202
        %p204 = scmp.lt.s32.totalorder %s19, 1
        %s205 = scalar_select %p204, %s19, 1
        %s206 = smul.addr %s205, 8
        %s207 = scalar_lea.vmem %s0, %s206
        %v209 = vld [vmem:[%s207] sm:$0xff]
        %vm210 = vcmp.ne.f32.partialorder %v209, %v209
        %v211 = vmax.f32 %v209, -3.4028235e+38
        %v212 = vmin.f32 %v211, 3.4028235e+38
        %v213 = vsel %vm210, 0.0, %v212
        %v214 = vld [vmem:[%s1] sm:$0x1]
        %v215 = vld [vmem:[%s1 + $0x1] sm:$0x1]
        %v216 = vlaneseq
        %v217 = vshrl.u32 %v216, 7
        %v218 = vsub.s32 0, %v217
        %v219 = vrot.slane %v215, %v218
        %vm220 = vcmask 7168
        %v222 = vsel %vm220, %v213, 0
        %vm224 = vcmask 1040384
        %v226 = vsel %vm224, %v214, 0
        %228 = vmatprep.subr.mxu0 0.0
        %229 = vmatpush1.msra.mxu0 0.0
        %230 = vmatprep.subr.mxu0 0.0
        %231 = vmatpush1.msra.mxu0 0.0
        %232 = vmatprep.subr.mxu0 0.0
        %233 = vmatpush1.msra.mxu0 0.0
        %234 = vmatprep.subr.mxu0 0.0
        %235 = vmatpush1.msra.mxu0 0.0
        %236 = vmatprep.subr.mxu0 0.0
        %237 = vmatpush1.msra.mxu0 0.0
        %238 = vmatprep.subr.mxu0 0.0
        %239 = vmatpush1.msra.mxu0 0.0
        %240 = vmatprep.subr.mxu0 0.0
        %241 = vmatpush1.msra.mxu0 0.0
        %242 = vmatprep.subr.mxu0 0.0
        %243 = vmatpush1.msra.mxu0 0.0
        %244 = vmatprep.subr.mxu0 0.0
        %245 = vmatpush1.msra.mxu0 0.0
        %246 = vmatprep.subr.mxu0 0.0
        %247 = vmatpush1.msra.mxu0 0.0
        %248 = vmatprep.subr.mxu0 0.0
        %249 = vmatpush1.msra.mxu0 0.0
        %250 = vmatprep.subr.mxu0 0.0
        %251 = vmatpush1.msra.mxu0 0.0
        %252 = vmatprep.subr.mxu0 0.0
        %253 = vmatpush1.msra.mxu0 0.0
        %254 = vmatprep.subr.mxu0 0.0
        %255 = vmatpush1.msra.mxu0 0.0
        %256 = vmatprep.subr.mxu0 0.0
        %257 = vmatpush1.msra.mxu0 0.0
        %258 = vmatprep.subr.mxu0 0.0
        %259 = vmatpush1.msra.mxu0 %v226
        %260 = vmatprep.subr.mxu0 0.0
        %261 = vmatpush2.msra.mxu0 0.0
        %262 = vmatprep.subr.mxu0 0.0
        %263 = vmatpush2.msra.mxu0 0.0
        %264 = vmatprep.subr.mxu0 0.0
        %265 = vmatpush2.msra.mxu0 0.0
        %266 = vmatprep.subr.mxu0 0.0
        %267 = vmatpush2.msra.mxu0 0.0
        %268 = vmatprep.subr.mxu0 0.0
        %269 = vmatpush2.msra.mxu0 0.0
        %270 = vmatprep.subr.mxu0 0.0
        %271 = vmatpush2.msra.mxu0 0.0
        %272 = vmatprep.subr.mxu0 0.0
        %273 = vmatpush2.msra.mxu0 0.0
        %274 = vmatprep.subr.mxu0 0.0
        %275 = vmatpush2.msra.mxu0 0.0
        %276 = vmatprep.subr.mxu0 0.0
        %277 = vmatpush2.msra.mxu0 0.0
        %278 = vmatprep.subr.mxu0 0.0
        %279 = vmatpush2.msra.mxu0 0.0
        %280 = vmatprep.subr.mxu0 0.0
        %281 = vmatpush2.msra.mxu0 0.0
        %282 = vmatprep.subr.mxu0 0.0
        %283 = vmatpush2.msra.mxu0 0.0
        %284 = vmatprep.subr.mxu0 0.0
        %285 = vmatpush2.msra.mxu0 0.0
        %286 = vmatprep.subr.mxu0 0.0
        %287 = vmatpush2.msra.mxu0 0.0
        %288 = vmatprep.subr.mxu0 0.0
        %289 = vmatpush2.msra.mxu0 0.0
        %290 = vmatprep.subr.mxu0 0.0
        %291 = vmatpush2.msra.mxu0 0.0
        %292 = vmatprep.mubr.f32.mxu0 0.0
        %293 = vmatmul.mubr.f32.gmra.mxu0 %v222
        %v294 = vpop.f32.mrf.mxu0
        %v295 = vadd.f32 %v219, %v294
        %v296 = vpop.f32.mrf.mxu0
        %297 = vdwg.mxu0
        %v298 = vmax.f32 %v295, 0.0
        %v299 = vld [vmem:[%s3] sm:$0x1]
        %v300 = vld [vmem:[%s3 + $0x1] sm:$0x1]
        %v301 = vld [vmem:[%s3 + $0x2] sm:$0x1]
        %v302 = vld [vmem:[%s3 + $0x3] sm:$0x1]
        %v303 = vld [vmem:[#allocation2] sm:$0xf]
        %v304 = vld [vmem:[#allocation2 + $0x4] sm:$0xf]
        %v305 = vld [vmem:[#allocation2 + $0x8] sm:$0xf]
        %v306 = vld [vmem:[#allocation2 + $0xc] sm:$0xf]
        %v307 = vld [vmem:[#allocation2 + $0x10] sm:$0xf]
        %v308 = vld [vmem:[#allocation2 + $0x14] sm:$0xf]
        %v309 = vld [vmem:[#allocation2 + $0x18] sm:$0xf]
        %v310 = vld [vmem:[#allocation2 + $0x1c] sm:$0xf]
        %v311 = vpack.c.bf16 %v298, %v298
        %v312 = vlaneseq
        %v313 = vshrl.u32 %v312, 7
        %v314 = vsub.s32 0, %v313
        %v315 = vrot.slane %v299, %v314
        %v324 = vunpack.c.l.b16 %v303
        %v325 = vunpack.c.l.b16 %v304
        %v326 = vunpack.c.l.b16 %v305
        %v327 = vunpack.c.l.b16 %v306
        %v328 = vunpack.c.l.b16 %v307
        %v329 = vunpack.c.l.b16 %v308
        %v330 = vunpack.c.l.b16 %v309
        %v331 = vunpack.c.l.b16 %v310
        %v332 = vpack.c.b16 %v325, %v324
        %v333 = vpack.c.b16 %v327, %v326
        %v334 = vpack.c.b16 %v329, %v328
        %v335 = vpack.c.b16 %v331, %v330
        %vm340 = vcmask 523264
        %v342 = vsel %vm340, %v311, 0
        %344 = vmatprep.subr.bf16.mxu0 0
        %345 = vmatpush1.bf16.msra.mxu0 0
        %346 = vmatprep.subr.bf16.mxu0 0
        %347 = vmatpush1.bf16.msra.mxu0 0
        %348 = vmatprep.subr.bf16.mxu0 0
        %349 = vmatpush1.bf16.msra.mxu0 0
        %350 = vmatprep.subr.bf16.mxu0 0
        %351 = vmatpush1.bf16.msra.mxu0 0
        %352 = vmatprep.subr.bf16.mxu0 0
        %353 = vmatpush1.bf16.msra.mxu0 %v335
        %354 = vmatprep.subr.bf16.mxu0 0
        %355 = vmatpush1.bf16.msra.mxu0 %v334
        %356 = vmatprep.subr.bf16.mxu0 0
        %357 = vmatpush1.bf16.msra.mxu0 %v333
        %358 = vmatprep.subr.bf16.mxu0 0
        %359 = vmatpush1.bf16.msra.mxu0 %v332
        %360 = vmatprep.subr.bf16.mxu0 0
        %361 = vmatpush2.bf16.msra.mxu0 0
        %362 = vmatprep.subr.bf16.mxu0 0
        %363 = vmatpush2.bf16.msra.mxu0 0
        %364 = vmatprep.subr.bf16.mxu0 0
        %365 = vmatpush2.bf16.msra.mxu0 0
        %366 = vmatprep.subr.bf16.mxu0 0
        %367 = vmatpush2.bf16.msra.mxu0 0
        %368 = vmatprep.subr.bf16.mxu0 0
        %369 = vmatpush2.bf16.msra.mxu0 0
        %370 = vmatprep.subr.bf16.mxu0 0
        %371 = vmatpush2.bf16.msra.mxu0 0
        %372 = vmatprep.subr.bf16.mxu0 0
        %373 = vmatpush2.bf16.msra.mxu0 0
        %374 = vmatprep.subr.bf16.mxu0 0
        %375 = vmatpush2.bf16.msra.mxu0 0
        %376 = vmatprep.mubr.bf16.mxu0 0
        %377 = vmatmul.mubr.bf16.gmra.mxu0 %v342
        %v378 = vpop.f32.mrf.mxu0
        %v379 = vadd.f32 %v315, %v378
        %v380 = vpop.f32.mrf.mxu0
        %v381 = vpop.f32.mrf.mxu0
        %v382 = vpop.f32.mrf.mxu0
        %383 = vdwg.mxu0
        %384 = vadd.xlane.f32.xlu0 %v379
        %v385 = vpop.xlane.xlu0 %384
        %v386 = vmul.f32 %v385, 0.0078125
        %v387 = vmul.f32 %v379, %v379
        %388 = vadd.xlane.f32.xlu0 %v387
        %v389 = vpop.xlane.xlu0 %388
        %v390 = vmul.f32 %v389, 0.0078125
        %v391 = vmul.f32 %v386, %v386
        %v392 = vsub.f32 %v390, %v391
        %v393 = vmax.f32 %v392, 0.0
        %v394 = vsub.f32 %v379, %v386
        %v395 = vadd.f32 %v393, 1e-12
        %v396 = vrsqrt.pop %v395
        %v397 = vmul.f32 %v394, %v396
        %v398 = vlaneseq
        %v399 = vshrl.u32 %v398, 7
        %v400 = vsub.s32 0, %v399
        %v401 = vrot.slane %v300, %v400
        %v402 = vmul.f32 %v397, %v401
        %v403 = vlaneseq
        %v404 = vshrl.u32 %v403, 7
        %v405 = vsub.s32 0, %v404
        %v406 = vrot.slane %v301, %v405
        %v407 = vadd.f32 %v402, %v406
        %v408 = vsel %vm210, 1, 0
        %409 = vset.pattern.permute.xlu0 0
        %410 = vperm.xlu0 %409, %v408
        %v411 = vpop.permute.xlu0 %410
        %vm412 = vcmp.eq.s32.totalorder %v411, 1
        %v413 = vlaneseq
        %v414 = vshrl.u32 %v413, 7
        %v415 = vsub.s32 0, %v414
        %v416 = vrot.slane %v302, %v415
        %v417 = vsel %vm412, %v416, %v407
        %418 = vst [vmem:[%s203] sm:$0xff] %v417
        %s419 = sand.u32 %s116, 1
        %s420 = scalar_lea.sflag [#allocation4], %s419
        %s421 = sand.u32 %s116, 1
        %s422 = smul.addr %s421, 8
        %s423 = scalar_lea.vmem [#allocation5], %s422
        // Predicated region
        $region41: #{tpu_custom_call.1} parent=35 // pred_check
          %p424 = pneg %p126
        $region42: #{tpu_custom_call.1} parent=35 // pred_check_branch
          %426 = sbr.rel (%p424) target = $region44
        $region43: #{tpu_custom_call.1} parent=35 // pred_region
          %s428 = ssub.s32 128, 128
          %429 = vsyncadd %s420, %s428
          %s430 = smul.addr %s19, 128
          %s431 = scalar_lea.hbm %s4, %s430
          %s433 = sshll.u32 %s423, 4
          %s434 = int_to_ptr.vmem [resolvable:$true] %s433
          %436 = dma.vmem_to_hbm [thread:$0]  %s434, 128, %s431, %s420
        $region44: #{tpu_custom_call.1} parent=35 // pred_fallthru
          _
      $region36: #{tpu_custom_call.1} parent=5 // pred_fallthru
        _
      %p437 = scmp.le.s32.totalorder 2, %s14
      // Predicated region
      $region45: #{tpu_custom_call.1} parent=5 // pred_check
        %p438 = pneg %p437
      $region46: #{tpu_custom_call.1} parent=5 // pred_check_branch
        %440 = sbr.rel (%p438) target = $region48
      $region47: #{tpu_custom_call.1} parent=5 // pred_region
        %s441 = ssub.s32 %s14, 2
        // Predicated region
        $region49: #{tpu_custom_call.1} parent=47 // pred_check
          %p442 = pneg %p132
        $region50: #{tpu_custom_call.1} parent=47 // pred_check_branch
          %444 = sbr.rel (%p442) target = $region52
        $region51: #{tpu_custom_call.1} parent=47 // pred_region
          %s445 = sand.u32 %s117, 1
          %s446 = scalar_lea.sflag [#allocation4], %s445
          %s447 = sand.u32 %s117, 1
          %s448 = smul.addr %s447, 8
          %s449 = scalar_lea.vmem [#allocation5], %s448
          %450 = dma.done %s446, 128
        $region52: #{tpu_custom_call.1} parent=47 // pred_fallthru
          _
      $region48: #{tpu_custom_call.1} parent=5 // pred_fallthru
        _
    $region6: #{tpu_custom_call.1} parent=1 // loop_footer
      %s18 = sadd.s32 1, %s14
    $region7: #{tpu_custom_call.1} parent=1 // loop_footer_branch
      %13 = sbr.rel target = $region3
    $region8: #{tpu_custom_call.1} parent=1 // loop_exit
      _
    %451 = vsyncpa [#allocation3], 1
    %s452 = scalar_lea.sflag [#allocation3], 1
    %453 = vsyncpa %s452, 1
    %454 = vsyncpa [#allocation4], 1
    %s455 = scalar_lea.sflag [#allocation4], 1
    %456 = vsyncpa %s455, 1

</llo_original>
